<compile_context>
chip_gen: v7x
topology: tpu7x:2x2x1
jax: 0.10.0
libtpu: 0.0.40
codegen_flags: <defaults>
</compile_context>

<pallas_src>
import functools

import jax
import jax.numpy as jnp
from jax.experimental import pallas as pl
from jax.experimental.pallas import tpu as pltpu

_LANE = 128            # lane-dense last dim -> unmasked vector stores
_SUBLANE = 8
_MAX_TILE_ROWS = 4096  # 4096 * 128 * 4B = 2 MiB per f32 tile buffer
_MIN_GRID = 8          # keep both v7x TensorCores busy + pipeline overlap
_GOLDEN = 0x9E3779B9


def _splitmix32(h):
    """Per-element uint32 mixer (2 multiply rounds, pure VPU integer ops)."""
    h = (h ^ (h >> 16)) * jnp.uint32(0x7FEB352D)
    h = (h ^ (h >> 15)) * jnp.uint32(0x846CA68B)
    return h ^ (h >> 16)


def _locked_dropout_kernel(seed_ref, x_ref, out_ref, *,
                           mask_keep, scale, tile_rows):
    """out = x * scale * Bernoulli(mask_keep) with the mask derived from
    (global flat index, seed) so it is identical across calls ("locked")."""
    x = x_ref[...]
    if mask_keep >= 1.0:  # static Python branch: dropout == 0 on the lock call
        out_ref[...] = (x.astype(jnp.float32) * jnp.float32(scale)).astype(out_ref.dtype)
        return

    shape = x_ref.shape  # (tile_rows, _LANE)
    r = jax.lax.broadcasted_iota(jnp.int32, shape, 0).astype(jnp.uint32)
    c = jax.lax.broadcasted_iota(jnp.int32, shape, 1).astype(jnp.uint32)
    local = r * jnp.uint32(_LANE) + c                       # loop-invariant
    base = pl.program_id(0).astype(jnp.uint32) * jnp.uint32(tile_rows * _LANE)
    gidx = base + local                                     # global flat index

    seed_u = jnp.uint32(seed_ref[0]) * jnp.uint32(_GOLDEN)
    h = _splitmix32(gidx ^ seed_u)

    # Integer threshold compare + fused select (no float-uniform construction).
    thresh = jnp.uint32(min(int(mask_keep * float(2 ** 32)), 2 ** 32 - 1))
    m = jnp.where(h < thresh, jnp.float32(scale), jnp.float32(0.0))
    out_ref[...] = (x.astype(jnp.float32) * m).astype(out_ref.dtype)


def _tile_rows_for(rows):
    """Multi-MiB tiles, but keep the grid >= _MIN_GRID steps when possible."""
    if rows <= _SUBLANE:
        return rows                                   # full-extent block
    tr = min(_MAX_TILE_ROWS, max(_SUBLANE, rows // _MIN_GRID))
    tr = max(_SUBLANE, (tr // _SUBLANE) * _SUBLANE)   # block rows % 8 == 0
    return min(tr, rows)


def _as_slab(x):
    """Lane-dense (rows, 128) view of x; pads only for ragged sizes."""
    n = x.size
    flat = x.reshape(-1)
    pad = (-n) % _LANE
    if pad:  # rare fallback; common case (n % 128 == 0) is a free reshape
        flat = jnp.pad(flat, (0, pad))
    return flat.reshape(-1, _LANE), pad


def _locked_dropout_apply(x, seed, mask_keep, scale):
    n = x.size
    slab, pad = _as_slab(x)
    rows = slab.shape[0]
    tile_rows = _tile_rows_for(rows)
    grid = (pl.cdiv(rows, tile_rows),)  # non-divisible grid: Pallas clamps last block

    # index_map receives the scalar-prefetch (seed) ref as a trailing arg.
    blk = pl.BlockSpec((tile_rows, _LANE), lambda i, seed_ref: (i, 0))
    out = pl.pallas_call(
        functools.partial(_locked_dropout_kernel,
                          mask_keep=float(mask_keep), scale=float(scale),
                          tile_rows=tile_rows),
        out_shape=jax.ShapeDtypeStruct(slab.shape, x.dtype),
        grid_spec=pltpu.PrefetchScalarGridSpec(
            num_scalar_prefetch=1,
            grid=grid,
            in_specs=[blk],
            out_specs=blk,
        ),
        compiler_params=pltpu.CompilerParams(dimension_semantics=("parallel",)),
    )(jnp.asarray([seed], dtype=jnp.int32), slab)

    if pad:
        out = out.reshape(-1)[:n]
    return out.reshape(x.shape)


class LockedDropout:
    """Stateful wrapper mirroring the PyTorch module.  Instead of a dense
    cached mask, it caches (seed, first-call keep-prob) and regenerates the
    locked mask in-kernel on every call (pure HBM-byte saving)."""

    def __init__(self):
        self._seed = None
        self._mask_keep = None
        self._shape = None
        self._dtype = None

    def reset_state(self):
        self._seed = None
        self._mask_keep = None
        self._shape = None
        self._dtype = None

    @property
    def m(self):
        """Lazily materialized binary {0,1} locked mask (debug/export only)."""
        if self._seed is None:
            return None
        ones = jnp.ones(self._shape, self._dtype)
        return _locked_dropout_apply(ones, self._seed, self._mask_keep, 1.0)

    def __call__(self, x, seed, dropout=0.5, train=True):
        if not train:
            return x
        if not (0.0 <= dropout < 1.0):
            raise ValueError("dropout must be in [0, 1)")

        if self._seed is None:
            # Lock the binary mask: seed + keep-prob of the FIRST train call.
            self._seed = int(seed)
            self._mask_keep = 1.0 - float(dropout)
            self._shape = x.shape
            self._dtype = x.dtype

        # Scale uses the CURRENT call's dropout (matches PyTorch's forward).
        scale = 1.0 / (1.0 - float(dropout))
        if self._mask_keep >= 1.0 and scale == 1.0:
            return x  # exact identity, no kernel
        return _locked_dropout_apply(x, self._seed, self._mask_keep, scale)


def _ref_mask(shape, seed, mask_keep, dtype):
    """Pure-jnp reference of the in-kernel hash (for correctness checking)."""
    n = 1
    for d in shape:
        n *= int(d)
    idx = jnp.arange(n, dtype=jnp.uint32)
    h = _splitmix32(idx ^ (jnp.uint32(seed) * jnp.uint32(_GOLDEN)))
    thresh = jnp.uint32(min(int(mask_keep * float(2 ** 32)), 2 ** 32 - 1))
    return (h < thresh).astype(dtype).reshape(shape)


if __name__ == "__main__":
    key = jax.random.PRNGKey(0)
    T, B, H = 8, 2, 32
    x = jax.random.normal(key, (T, B, H), dtype=jnp.float32)

    ld = LockedDropout()
    dropout = 0.5
    scale = 1.0 / (1.0 - dropout)

    # First call: locks the mask (via seed + keep-prob) and applies it.
    y1 = jax.block_until_ready(ld(x, seed=1234, dropout=dropout, train=True))

    # Second call with different input (and ignored seed) reuses the SAME mask.
    x2 = x + 1.0
    y2 = jax.block_until_ready(ld(x2, seed=9999, dropout=dropout, train=True))

    # eval mode: identity
    y_eval = ld(x, seed=0, dropout=dropout, train=False)

    # Sanity checks against the reference semantics.
    mask = ld.m                        # binary {0,1} locked mask
    assert mask.shape == x.shape
    vals = jnp.unique(mask)
    assert bool(jnp.all((vals == 0.0) | (vals == 1.0)))
    assert jnp.allclose(y1, x * mask * scale, atol=1e-6)
    assert jnp.allclose(y2, x2 * mask * scale, atol=1e-6)   # same mask both calls
    assert jnp.allclose(y_eval, x)
    # Cross-check the in-kernel hash against a pure-jnp reference.
    assert jnp.array_equal(mask, _ref_mask(x.shape, 1234, 1.0 - dropout, x.dtype))

    # dropout == 0 must be exact identity.
    ld0 = LockedDropout()
    y0 = jax.block_until_ready(ld0(x, seed=7, dropout=0.0, train=True))
    assert jnp.array_equal(y0, x)

    print("KERNEL_OK")
</pallas_src>

<mosaic_0001>
module attributes {stable_mosaic.version = 11 : i64} {
  func.func @_locked_dropout_kernel(%arg0: i32, %arg1: memref<1xi32, #tpu.memory_space<smem>>, %arg2: memref<4x128xf32, #tpu.memory_space<vmem>>, %arg3: memref<4x128xf32, #tpu.memory_space<vmem>>) attributes {dimension_semantics = [#tpu.dimension_semantics<parallel>], iteration_bounds = array<i64: 1>, scalar_prefetch = 1 : i64, scratch_operands = 0 : i64, tpu.core_type = #tpu.core_type<tc>, window_params = [{transform_indices = @transform_0, window_bounds = array<i64: 4, 128>}, {transform_indices = @transform_1, window_bounds = array<i64: 4, 128>}]} {
    %c0 = arith.constant 0 : index
    %c0_0 = arith.constant 0 : index
    %0 = vector.load %arg2[%c0, %c0_0] : memref<4x128xf32, #tpu.memory_space<vmem>>, vector<4x128xf32>
    %1 = tpu.iota {dimensions = array<i32: 0>} : vector<4x128xi32>
    %2 = tpu.iota {dimensions = array<i32: 1>} : vector<4x128xi32>
    %c128_i32 = arith.constant 128 : i32
    %3 = vector.broadcast %c128_i32 : i32 to vector<4x128xi32>
    %4 = arith.muli %1, %3 : vector<4x128xi32>
    %5 = arith.addi %4, %2 : vector<4x128xi32>
    %c512_i32 = arith.constant 512 : i32
    %6 = arith.muli %arg0, %c512_i32 : i32
    %7 = vector.broadcast %6 : i32 to vector<4x128xi32>
    %8 = arith.addi %7, %5 : vector<4x128xi32>
    %c0_1 = arith.constant 0 : index
    %9 = memref.load %arg1[%c0_1] : memref<1xi32, #tpu.memory_space<smem>>
    %c-1640531527_i32 = arith.constant -1640531527 : i32
    %10 = arith.muli %9, %c-1640531527_i32 : i32
    %11 = vector.broadcast %10 : i32 to vector<4x128xi32>
    %12 = arith.xori %8, %11 : vector<4x128xi32>
    %c16_i32 = arith.constant 16 : i32
    %13 = vector.broadcast %c16_i32 : i32 to vector<4x128xi32>
    %14 = arith.shrui %12, %13 : vector<4x128xi32>
    %15 = arith.xori %12, %14 : vector<4x128xi32>
    %c2146121005_i32 = arith.constant 2146121005 : i32
    %16 = vector.broadcast %c2146121005_i32 : i32 to vector<4x128xi32>
    %17 = arith.muli %15, %16 : vector<4x128xi32>
    %c15_i32 = arith.constant 15 : i32
    %18 = vector.broadcast %c15_i32 : i32 to vector<4x128xi32>
    %19 = arith.shrui %17, %18 : vector<4x128xi32>
    %20 = arith.xori %17, %19 : vector<4x128xi32>
    %c-2073254261_i32 = arith.constant -2073254261 : i32
    %21 = vector.broadcast %c-2073254261_i32 : i32 to vector<4x128xi32>
    %22 = arith.muli %20, %21 : vector<4x128xi32>
    %c16_i32_2 = arith.constant 16 : i32
    %23 = vector.broadcast %c16_i32_2 : i32 to vector<4x128xi32>
    %24 = arith.shrui %22, %23 : vector<4x128xi32>
    %25 = arith.xori %22, %24 : vector<4x128xi32>
    %c-2147483648_i32 = arith.constant -2147483648 : i32
    %26 = vector.broadcast %c-2147483648_i32 : i32 to vector<4x128xi32>
    %27 = arith.cmpi ult, %25, %26 : vector<4x128xi32>
    %cst = arith.constant 2.000000e+00 : f32
    %cst_3 = arith.constant 0.000000e+00 : f32
    %28 = vector.broadcast %cst : f32 to vector<4x128xf32>
    %29 = vector.broadcast %cst_3 : f32 to vector<4x128xf32>
    %30 = arith.select %27, %28, %29 : vector<4x128xi1>, vector<4x128xf32>
    %31 = arith.mulf %0, %30 : vector<4x128xf32>
    %c0_4 = arith.constant 0 : index
    %c0_5 = arith.constant 0 : index
    %32 = vector.load %arg3[%c0_4, %c0_5] : memref<4x128xf32, #tpu.memory_space<vmem>>, vector<4x128xf32>
    tpu.vector_store %arg3[%c0_4, %c0_5], %31 {strides = array<i32>} : memref<4x128xf32, #tpu.memory_space<vmem>>, vector<4x128xf32>,
    return
  }
  func.func @transform_0(%arg0: i32, %arg1: memref<1xi32, #tpu.memory_space<smem>>) -> (i32, i32) {
    %c0_i32 = arith.constant 0 : i32
    %c0_i32_0 = arith.constant 0 : i32
    return %arg0, %c0_i32 : i32, i32
  }
  func.func @transform_1(%arg0: i32, %arg1: memref<1xi32, #tpu.memory_space<smem>>) -> (i32, i32) {
    %c0_i32 = arith.constant 0 : i32
    %c0_i32_0 = arith.constant 0 : i32
    return %arg0, %c0_i32 : i32, i32
  }
}

</mosaic_0001>

<llo_original>
// kernel: tpu_custom_call.1
$region0: #{tpu_custom_call.1}
  #allocation0 [shape = 'u32[]', space=smem, size = 0x4, offset = 0x4, fixed_abs, tag = 'smem constant byte address 0x4 - core index']
  #allocation1 [shape = 'u32[144,128]{1,0:T(1,128)}', space=vmem, size = 0x12000, scoped, tag = 'internal scratch']
  #allocation2 [shape = 's32[1]{0}', space=sflag, size = 0x4, scoped, tag = 'scoped memory for tpu_custom_call.1']
  #allocation3 [shape = 's32[1]{0:T(128)S(6)}', space=smem, size = 0x200, scoped, tag = 'prefetched SMEM operand 0']
  %s0 = inlined_call_operand.<no memory space> [shape: s32[1], index: 0, kind: input, shape index: {}]
  %s1 = inlined_call_operand.hbm [shape: f32[4,128], index: 1, kind: input, shape index: {}]
  %s2 = inlined_call_operand.hbm [shape: f32[4,128], index: 2, kind: output, shape index: {}]
  %s3 = sld [smem:[#allocation0]]
  $region18: #{tpu_custom_call.1} parent=0
    _
  %s5 = ssub.s32 1, %s3
  %s6 = scalar_select 0, %s5, %s3
  %7 = sst [smem:[#allocation3]] %s0
  $region1: #{tpu_custom_call.1} parent=0
    #allocation4 [shape = 'u8[2048]{0}', space=vmem, size = 0x800, scoped, tag = 'input window, operand 1, single buffered']
    #allocation5 [shape = 's32[1]{0}', space=sflag, size = 0x4, scoped, tag = 'scoped memory for tpu_custom_call.1']
    #allocation6 [shape = 's32[1]{0}', space=sflag, size = 0x4, scoped, tag = 'scoped memory for tpu_custom_call.1']
    #allocation7 [shape = 'u8[2048]{0}', space=vmem, size = 0x800, scoped, tag = 'output window, operand 0, single buffered']
    %8 = vsyncpa [#allocation5], 0
    %9 = vsyncpa [#allocation6], 0
    // Predicated region
    $region2: #{tpu_custom_call.1} parent=1 // pred_check
      _
    $region3: #{tpu_custom_call.1} parent=1 // pred_check_branch
      %11 = sbr.rel (0) target = $region5
    $region4: #{tpu_custom_call.1} parent=1 // pred_region
      %s13 = ssub.s32 64, 64
      %14 = vsyncadd [#allocation5], %s13
      %s16 = sshll.u32 [#allocation4], 4
      %s17 = int_to_ptr.vmem [resolvable:$true] %s16
      %19 = dma.hbm_to_vmem [thread:$0]  %s1, 64, %s17, [#allocation5]
    $region5: #{tpu_custom_call.1} parent=1 // pred_fallthru
      _
    // Predicated region
    $region6: #{tpu_custom_call.1} parent=1 // pred_check
      _
    $region7: #{tpu_custom_call.1} parent=1 // pred_check_branch
      %21 = sbr.rel (0) target = $region9
    $region8: #{tpu_custom_call.1} parent=1 // pred_region
      %22 = dma.done [#allocation5], 64
    $region9: #{tpu_custom_call.1} parent=1 // pred_fallthru
      _
    %v23 = vld [vmem:[#allocation4] sm:$0xf]
    %v24 = vlaneseq
    %v25 = vshrl.u32 %v24, 7
    %v26 = vlaneseq
    %v27 = vand.u32 %v26, 127
    %v28 = vmul.u32 %v25, 128
    %v29 = vadd.s32 %v28, %v27
    %s30 = smul.u32 0, 512
    %v31 = vstv %s30
    %v32 = vadd.s32 %v31, %v29
    %s33 = sld [smem:[#allocation3]]
    %s34 = smul.u32 %s33, 2654435769
    %v35 = vstv %s34
    %v36 = vxor.u32 %v32, %v35
    %v37 = vshrl.u32 %v36, 16
    %v38 = vxor.u32 %v36, %v37
    %v39 = vmul.u32 %v38, 2146121005
    %v40 = vshrl.u32 %v39, 15
    %v41 = vxor.u32 %v39, %v40
    %v42 = vmul.u32 %v41, 2221713035
    %v43 = vshrl.u32 %v42, 16
    %v44 = vxor.u32 %v42, %v43
    %vm45 = vcmp.lt.u32.totalorder %v44, 2147483648
    %v46 = vsel %vm45, 2.0, 0.0
    %v47 = vmul.f32 %v23, %v46
    %48 = vst [vmem:[#allocation7] sm:$0xf] %v47
    // Predicated region
    $region10: #{tpu_custom_call.1} parent=1 // pred_check
      _
    $region11: #{tpu_custom_call.1} parent=1 // pred_check_branch
      %50 = sbr.rel (0) target = $region13
    $region12: #{tpu_custom_call.1} parent=1 // pred_region
      %s52 = ssub.s32 64, 64
      %53 = vsyncadd [#allocation6], %s52
      %s55 = sshll.u32 [#allocation7], 4
      %s56 = int_to_ptr.vmem [resolvable:$true] %s55
      %58 = dma.vmem_to_hbm [thread:$0]  %s56, 64, %s2, [#allocation6]
    $region13: #{tpu_custom_call.1} parent=1 // pred_fallthru
      _
    // Predicated region
    $region14: #{tpu_custom_call.1} parent=1 // pred_check
      _
    $region15: #{tpu_custom_call.1} parent=1 // pred_check_branch
      %60 = sbr.rel (0) target = $region17
    $region16: #{tpu_custom_call.1} parent=1 // pred_region
      %61 = dma.done [#allocation6], 64
    $region17: #{tpu_custom_call.1} parent=1 // pred_fallthru
      _
    %62 = vsyncpa [#allocation5], 1
    %63 = vsyncpa [#allocation6], 1

</llo_original>
